<compile_context>
chip_gen: v7x
topology: tpu7x:2x2x1
jax: 0.10.0
libtpu: 0.0.40
codegen_flags: <defaults>
</compile_context>

<pallas_src>
import jax
import jax.numpy as jnp
from jax.experimental import pallas as pl
from jax.experimental.pallas import tpu as pltpu


# ---------------------------------------------------------------------------
# Kernel A: K-pipelined partial matmul.  grid = (S splits, K steps per split).
# ---------------------------------------------------------------------------
def _matmul_partial_kernel():
    def kernel(x_ref, w_ref, part_ref):
        # x_ref   : (B, tk)   x K-tile (pipelined)
        # w_ref   : (P, tk)   weight K-tile in its natural nn.Linear layout (pipelined)
        # part_ref: (B, P)    partial logits for this split (resident across K steps)
        @pl.when(pl.program_id(1) == 0)
        def _init():
            part_ref[...] = jnp.zeros_like(part_ref)

        # (B, tk) . (P, tk)^T -> (B, P); contraction over the last dims keeps the
        # weight lane-dense in HBM with zero layout copies.
        part_ref[...] += jax.lax.dot_general(
            x_ref[...], w_ref[...],
            dimension_numbers=(((1,), (1,)), ((), ())),
            preferred_element_type=jnp.float32,
        )

    return kernel


# ---------------------------------------------------------------------------
# Kernel B: tiny grid-less epilogue — combine partials, add bias, CE loss.
# ---------------------------------------------------------------------------
def _epilogue_kernel(num_pages, loss_weight, compute_loss):
    def kernel(tgt_ref, parts_ref, b_ref, logits_ref, loss_ref):
        # tgt_ref   : (B,)     int32 in SMEM (answer_page_idx)
        # parts_ref : (S, B, P) f32 partial logits
        # b_ref     : (1, P)    bias
        # logits_ref: (B, P)    final logits
        # loss_ref  : (1, 1)    CE loss * loss_weight
        logits = (jnp.sum(parts_ref[...], axis=0)
                  + b_ref[...].astype(jnp.float32))            # (B, P) f32
        logits_ref[...] = logits.astype(logits_ref.dtype)

        if not compute_loss:
            loss_ref[...] = jnp.zeros_like(loss_ref)
            return

        bsz, p = logits.shape
        lane = jax.lax.broadcasted_iota(jnp.int32, (1, p), 1)
        total = jnp.zeros((1, 1), jnp.float32)
        count = jnp.zeros((1, 1), jnp.float32)
        # B (documents per batch) is small; static per-row loop with scalar SMEM reads.
        for b in range(bsz):
            t = tgt_ref[b]                                     # scalar int32
            row = logits[b:b + 1, :]                           # (1, P)
            m = jnp.max(row, axis=-1, keepdims=True)
            lse = m + jnp.log(jnp.sum(jnp.exp(row - m), axis=-1, keepdims=True))
            picked = jnp.sum(jnp.where(lane == t, row, jnp.float32(0.0)),
                             axis=-1, keepdims=True)
            # torch CrossEntropyLoss ignore_index: ignored / out-of-range targets are
            # excluded from both the sum and the mean denominator.
            is_valid = jnp.logical_and(t >= 0, t < num_pages)
            total = total + jnp.where(is_valid, lse - picked, jnp.float32(0.0))
            count = count + jnp.where(is_valid, jnp.float32(1.0), jnp.float32(0.0))

        loss = (jnp.float32(loss_weight) * total
                / jnp.maximum(count, jnp.float32(1.0)))
        loss_ref[...] = loss

    return kernel


# ---------------------------------------------------------------------------
# Tiling: pick (padded K, #core splits, K tile) from a VMEM budget.
# ---------------------------------------------------------------------------
def _choose_tiling(f_in, batch, pages, itemsize, vmem_budget=24 * 1024 * 1024):
    lane = 128
    n_blk = -(-f_in // lane)                                   # K in 128-lane blocks
    # double-buffered (B, tk) + (P, tk) streaming tiles must fit the budget
    cap_blk = max(1, vmem_budget // (2 * (batch + pages) * itemsize * lane))
    splits = 2 if (n_blk % 2 == 0 and n_blk >= 2) else 1        # v7x: one per TC
    nps = n_blk // splits                                       # blocks per split
    if nps <= cap_blk:
        t_blk = nps                                             # single K step / split
    else:
        best, d = 1, 1
        while d * d <= nps:                                     # largest divisor <= cap
            if nps % d == 0:
                for c in (d, nps // d):
                    if c <= cap_blk:
                        best = max(best, c)
            d += 1
        if best >= max(32, cap_blk // 8):
            t_blk = best                                        # good divisor, no pad
        else:
            t_blk = cap_blk                                     # awkward factorization:
            nps = -(-nps // t_blk) * t_blk                      # pad K minimally
    kp = splits * nps * lane
    return kp, splits, t_blk * lane, nps // t_blk               # (Kp, S, tk, k_steps)


# ---------------------------------------------------------------------------
# Forward wrapper (== PageRetrievalModule.forward)
# ---------------------------------------------------------------------------
def page_retrieval_forward(document_embeddings, answer_page_idx, weight, bias,
                           loss_weight=1.0):
    """document_embeddings: (B, ...); answer_page_idx: (B,) int or None.
    weight: (P, F_in) nn.Linear weight; bias: (P,).  Returns (loss, logits[B, P])."""
    batch = document_embeddings.shape[0]
    x = document_embeddings.reshape(batch, -1)                  # free (metadata) reshape
    pages, f_in = weight.shape
    f_act = x.shape[1]

    # torch try/except fallback: zero-pad flattened embeddings up to in_features.
    if f_act < f_in:
        x = jnp.pad(x, ((0, 0), (0, f_in - f_act)))
    elif f_act > f_in:
        raise ValueError(
            f"flattened embeddings ({f_act}) exceed page_retrieval.in_features ({f_in})")

    # Keep the incoming dtype (bf16 inputs halve the dominant HBM streams for free);
    # MXU always accumulates in f32 via preferred_element_type.
    cdt = jnp.promote_types(x.dtype, weight.dtype)
    x = x.astype(cdt)
    w = weight.astype(cdt)
    itemsize = jnp.dtype(cdt).itemsize

    kp, splits, tk, k_steps = _choose_tiling(f_in, batch, pages, itemsize)
    if kp != f_in:
        # Only for non-128-aligned / awkward K (typical hidden sizes keep F_in aligned,
        # so no extra HBM pass happens here).
        x = jnp.pad(x, ((0, 0), (0, kp - f_in)))
        w = jnp.pad(w, ((0, 0), (0, kp - f_in)))

    # ---- Kernel A: streaming partial matmul --------------------------------
    partials = pl.pallas_call(
        _matmul_partial_kernel(),
        out_shape=jax.ShapeDtypeStruct((splits, batch, pages), jnp.float32),
        grid=(splits, k_steps),
        in_specs=[
            pl.BlockSpec((batch, tk), lambda c, k: (0, c * k_steps + k)),   # x tile
            pl.BlockSpec((pages, tk), lambda c, k: (0, c * k_steps + k)),   # w tile
        ],
        out_specs=pl.BlockSpec((None, batch, pages), lambda c, k: (c, 0, 0)),
        compiler_params=pltpu.CompilerParams(
            dimension_semantics=("parallel", "arbitrary"),
            vmem_limit_bytes=32 * 1024 * 1024,        # within every gen's scoped VMEM
        ),
        cost_estimate=pl.CostEstimate(
            flops=2 * batch * kp * pages,
            transcendentals=0,
            bytes_accessed=itemsize * (batch * kp + pages * kp)
                           + 4 * splits * batch * pages,
        ),
    )(x, w)

    # ---- Kernel B: combine + bias + cross-entropy --------------------------
    compute_loss = answer_page_idx is not None
    if compute_loss:
        tgt = answer_page_idx.reshape(batch).astype(jnp.int32)
    else:
        tgt = jnp.full((batch,), -100, dtype=jnp.int32)
    bias2d = bias.reshape(1, pages)

    logits, loss_arr = pl.pallas_call(
        _epilogue_kernel(pages, float(loss_weight), compute_loss),
        out_shape=(jax.ShapeDtypeStruct((batch, pages), cdt),
                   jax.ShapeDtypeStruct((1, 1), jnp.float32)),
        in_specs=[
            pl.BlockSpec(memory_space=pltpu.MemorySpace.SMEM),   # targets (B,)
            pl.BlockSpec(memory_space=pltpu.MemorySpace.VMEM),   # partials (S,B,P)
            pl.BlockSpec(memory_space=pltpu.MemorySpace.VMEM),   # bias (1,P)
        ],
        out_specs=(pl.BlockSpec(memory_space=pltpu.MemorySpace.VMEM),
                   pl.BlockSpec(memory_space=pltpu.MemorySpace.VMEM)),
    )(tgt, partials, bias2d)

    loss = loss_arr[0, 0] if compute_loss else None
    return loss, logits


# ---------------------------------------------------------------------------
# Pure-JAX reference (mirrors the torch module)
# ---------------------------------------------------------------------------
def _reference_forward(document_embeddings, answer_page_idx, weight, bias, loss_weight):
    batch = document_embeddings.shape[0]
    x = document_embeddings.reshape(batch, -1).astype(jnp.float32)
    logits = jnp.dot(x, weight.T, precision=jax.lax.Precision.HIGHEST) + bias
    lse = jax.scipy.special.logsumexp(logits, axis=-1)
    picked = jnp.take_along_axis(logits, answer_page_idx[:, None], axis=-1)[:, 0]
    loss = jnp.mean(lse - picked) * loss_weight
    return loss, logits


if __name__ == "__main__":
    # Small synthetic config: max_doc_pages=4, page_tokens=8, hidden_size=32
    # -> in_features = 4 * 8 * 32 = 1024, batch B = 2.
    B, MAX_PAGES, PAGE_TOKENS, H = 2, 4, 8, 32
    F_IN = MAX_PAGES * PAGE_TOKENS * H
    LOSS_WEIGHT = 0.5

    key = jax.random.PRNGKey(0)
    k_emb, k_idx, k_w, k_b = jax.random.split(key, 4)

    document_embeddings = jax.random.normal(
        k_emb, (B, MAX_PAGES, PAGE_TOKENS, H), dtype=jnp.float32)
    answer_page_idx = jax.random.randint(k_idx, (B,), 0, MAX_PAGES, dtype=jnp.int32)
    weight = jax.random.normal(k_w, (MAX_PAGES, F_IN), dtype=jnp.float32) / jnp.sqrt(F_IN)
    bias = 0.01 * jax.random.normal(k_b, (MAX_PAGES,), dtype=jnp.float32)

    loss, logits = page_retrieval_forward(
        document_embeddings, answer_page_idx, weight, bias, loss_weight=LOSS_WEIGHT)
    logits = jax.block_until_ready(logits)
    loss = jax.block_until_ready(loss)

    ref_loss, ref_logits = _reference_forward(
        document_embeddings, answer_page_idx, weight, bias, LOSS_WEIGHT)

    assert logits.shape == (B, MAX_PAGES)
    assert jnp.allclose(logits, ref_logits, rtol=1e-3, atol=1e-3), "logits mismatch"
    assert jnp.allclose(loss, ref_loss, rtol=1e-3, atol=1e-3), "loss mismatch"

    # answer_page_idx=None path: returns (None, logits), same logits.
    loss_none, logits_none = page_retrieval_forward(
        document_embeddings, None, weight, bias, loss_weight=LOSS_WEIGHT)
    logits_none = jax.block_until_ready(logits_none)
    assert loss_none is None
    assert jnp.allclose(logits_none, ref_logits, rtol=1e-3, atol=1e-3), "logits mismatch (None path)"

    print("KERNEL_OK")
</pallas_src>

<mosaic_0001>
module attributes {stable_mosaic.version = 11 : i64} {
  func.func @kernel(%arg0: i32, %arg1: i32, %arg2: memref<2x512xf32, #tpu.memory_space<vmem>>, %arg3: memref<4x512xf32, #tpu.memory_space<vmem>>, %arg4: memref<1x2x4xf32, #tpu.memory_space<vmem>>) attributes {dimension_semantics = [#tpu.dimension_semantics<parallel>, #tpu.dimension_semantics<arbitrary>], iteration_bounds = array<i64: 2, 1>, scalar_prefetch = 0 : i64, scratch_operands = 0 : i64, tpu.core_type = #tpu.core_type<tc>, window_params = [{transform_indices = @transform_0, window_bounds = array<i64: 2, 512>}, {transform_indices = @transform_1, window_bounds = array<i64: 4, 512>}, {transform_indices = @transform_2, window_bounds = array<i64: 1, 2, 4>}]} {
    %c0_i32 = arith.constant 0 : i32
    %0 = arith.cmpi eq, %arg1, %c0_i32 : i32
    %1 = arith.extui %0 : i1 to i32
    %c0_i32_0 = arith.constant 0 : i32
    %2 = arith.cmpi ne, %1, %c0_i32_0 : i32
    scf.if %2 {
      %cst_10 = arith.constant 0.000000e+00 : f32
      %12 = vector.broadcast %cst_10 : f32 to vector<2x4xf32>
      %c0_11 = arith.constant 0 : index
      %c0_12 = arith.constant 0 : index
      %c0_13 = arith.constant 0 : index
      %13 = vector.load %arg4[%c0_11, %c0_12, %c0_13] : memref<1x2x4xf32, #tpu.memory_space<vmem>>, vector<1x2x4xf32>
      %14 = vector.shape_cast %13 : vector<1x2x4xf32> to vector<2x4xf32>
      %15 = vector.shape_cast %12 : vector<2x4xf32> to vector<1x2x4xf32>
      tpu.vector_store %arg4[%c0_11, %c0_12, %c0_13], %15 {strides = array<i32>} : memref<1x2x4xf32, #tpu.memory_space<vmem>>, vector<1x2x4xf32>,
    } else {
    }
    %c0 = arith.constant 0 : index
    %c0_1 = arith.constant 0 : index
    %c0_2 = arith.constant 0 : index
    %3 = vector.load %arg4[%c0, %c0_1, %c0_2] : memref<1x2x4xf32, #tpu.memory_space<vmem>>, vector<1x2x4xf32>
    %4 = vector.shape_cast %3 : vector<1x2x4xf32> to vector<2x4xf32>
    %c0_3 = arith.constant 0 : index
    %c0_4 = arith.constant 0 : index
    %5 = vector.load %arg2[%c0_3, %c0_4] : memref<2x512xf32, #tpu.memory_space<vmem>>, vector<2x512xf32>
    %c0_5 = arith.constant 0 : index
    %c0_6 = arith.constant 0 : index
    %6 = vector.load %arg3[%c0_5, %c0_6] : memref<4x512xf32, #tpu.memory_space<vmem>>, vector<4x512xf32>
    %cst = arith.constant dense<0.000000e+00> : vector<2x4xf32>
    %7 = tpu.matmul %5, %6, %cst {dimension_numbers = #tpu.dot_dimension_numbers<[1], [1], [0], [0], [0, 0, 1, 0], [], []>} : vector<2x512xf32>, vector<4x512xf32>, vector<2x4xf32> -> vector<2x4xf32>
    %8 = arith.addf %4, %7 : vector<2x4xf32>
    %c0_7 = arith.constant 0 : index
    %c0_8 = arith.constant 0 : index
    %c0_9 = arith.constant 0 : index
    %9 = vector.load %arg4[%c0_7, %c0_8, %c0_9] : memref<1x2x4xf32, #tpu.memory_space<vmem>>, vector<1x2x4xf32>
    %10 = vector.shape_cast %9 : vector<1x2x4xf32> to vector<2x4xf32>
    %11 = vector.shape_cast %8 : vector<2x4xf32> to vector<1x2x4xf32>
    tpu.vector_store %arg4[%c0_7, %c0_8, %c0_9], %11 {strides = array<i32>} : memref<1x2x4xf32, #tpu.memory_space<vmem>>, vector<1x2x4xf32>,
    return
  }
  func.func @transform_0(%arg0: i32, %arg1: i32) -> (i32, i32) {
    %c1_i32 = arith.constant 1 : i32
    %0 = arith.muli %arg0, %c1_i32 : i32
    %1 = arith.addi %0, %arg1 : i32
    %c0_i32 = arith.constant 0 : i32
    %c0_i32_0 = arith.constant 0 : i32
    return %c0_i32, %1 : i32, i32
  }
  func.func @transform_1(%arg0: i32, %arg1: i32) -> (i32, i32) {
    %c1_i32 = arith.constant 1 : i32
    %0 = arith.muli %arg0, %c1_i32 : i32
    %1 = arith.addi %0, %arg1 : i32
    %c0_i32 = arith.constant 0 : i32
    %c0_i32_0 = arith.constant 0 : i32
    return %c0_i32, %1 : i32, i32
  }
  func.func @transform_2(%arg0: i32, %arg1: i32) -> (i32, i32, i32) {
    %c0_i32 = arith.constant 0 : i32
    %c0_i32_0 = arith.constant 0 : i32
    %c0_i32_1 = arith.constant 0 : i32
    return %arg0, %c0_i32, %c0_i32_0 : i32, i32, i32
  }
}

</mosaic_0001>

<llo_original>
// kernel: tpu_custom_call.1
$region0: #{tpu_custom_call.1}
  #allocation0 [shape = 'u32[]', space=smem, size = 0x4, offset = 0x4, fixed_abs, tag = 'smem constant byte address 0x4 - core index']
  #allocation1 [shape = 'u32[144,128]{1,0:T(1,128)}', space=vmem, size = 0x12000, scoped, tag = 'internal scratch']
  %s0 = inlined_call_operand.hbm [shape: f32[2,1024], index: 0, kind: input, shape index: {}]
  %s1 = inlined_call_operand.hbm [shape: f32[4,1024], index: 1, kind: input, shape index: {}]
  %s2 = inlined_call_operand.hbm [shape: f32[2,2,4], index: 2, kind: output, shape index: {}]
  %s3 = sld [smem:[#allocation0]]
  $region53: #{tpu_custom_call.1} parent=0
    _
  %s5 = ssub.s32 1, %s3
  %s6 = scalar_select 0, %s5, %s3
  $region1: #{tpu_custom_call.1} parent=0
    #allocation2 [shape = 'u8[8192]{0}', space=vmem, size = 0x2000, scoped, tag = 'input window, operand 0']
    #allocation3 [shape = 's32[2]{0}', space=sflag, size = 0x8, scoped, tag = 'scoped memory for tpu_custom_call.1']
    #allocation4 [shape = 's32[2]{0}', space=sflag, size = 0x8, scoped, tag = 'scoped memory for tpu_custom_call.1']
    #allocation5 [shape = 'u8[16384]{0}', space=vmem, size = 0x4000, scoped, tag = 'input window, operand 1']
    #allocation6 [shape = 's32[2]{0}', space=sflag, size = 0x8, scoped, tag = 'scoped memory for tpu_custom_call.1']
    #allocation7 [shape = 'u8[2048]{0}', space=vmem, size = 0x800, scoped, tag = 'output window, operand 0']
    %7 = vsyncpa [#allocation3], 0
    %s8 = scalar_lea.sflag [#allocation3], 1
    %9 = vsyncpa %s8, 0
    %10 = vsyncpa [#allocation6], 0
    %s11 = scalar_lea.sflag [#allocation6], 1
    %12 = vsyncpa %s11, 0
    %13 = vsyncpa [#allocation4], 0
    %s14 = scalar_lea.sflag [#allocation4], 1
    %15 = vsyncpa %s14, 0
    loop: start=0, step=1, limit=4
    $region2: #{tpu_custom_call.1} parent=1 // loop_pre_header
      _
    $region3: #{tpu_custom_call.1} parent=1 // loop_header
      %s17 = sphi 0, %s21
      %p18 = scmp.ge.s32.totalorder %s17, 4
      %s24 = sphi 0, %s36
      %s25 = sphi 0, %s32
      %s26 = sphi 0, %s24
      %s27 = sphi 0, %s25
      %s28 = sphi 0, %s26
      %s29 = sphi 0, %s27
      %s41 = sphi 0, %s43
      %s44 = sphi 0, %s41
      %s45 = sphi 0, %s44
      %s61 = sphi 0, %s45
      %s69 = sphi 0, %s71
      %s72 = sphi 0, %s69
      %s73 = sphi 0, %s72
      %s89 = sphi 0, %s73
      %s95 = sphi 0, %s97
      %s98 = sphi 0, %s95
      %s99 = sphi 0, %s98
      %s115 = sphi 0, %s99
    $region4: #{tpu_custom_call.1} parent=1 // loop_header_branch
      %20 = sbr.rel (%p18) target = $region8
    $region5: #{tpu_custom_call.1} parent=1 // loop_body
      %s22 = ssub.s32 %s17, 1
      %s23 = ssub.s32 %s17, 2
      %s30 = sadd.s32 1, %s25
      %p31 = scmp.ge.s32.totalorder %s30, 1
      %s32 = scalar_select %p31, 0, %s30
      %s33 = sadd.s32 1, %s24
      %s34 = scalar_select %p31, %s33, %s24
      %p35 = scmp.ge.s32.totalorder %s34, 2
      %s36 = scalar_select %p35, 0, %s34
      %s37 = sadd.s32 %s24, %s25
      %s38 = sadd.s32 %s36, %s32
      %s39 = ssub.s32 %s37, %s38
      %p40 = scmp.eq.s32.totalorder %s39, 0
      %s42 = sadd.s32 %s41, 1
      %s43 = scalar_select %p40, %s41, %s42
      %p46 = pneg %p40
      %p47 = scmp.eq.s32.totalorder %s17, 1
      %p48 = por %p46, %p47
      %p49 = scmp.ne.s32.totalorder %s41, %s44
      %p50 = scmp.eq.s32.totalorder %s17, 0
      %p51 = por %p49, %p50
      %p52 = scmp.ne.s32.totalorder %s41, %s44
      %p53 = scmp.eq.s32.totalorder %s22, 1
      %p54 = por %p52, %p53
      %p55 = scmp.ne.s32.totalorder %s44, %s45
      %p56 = scmp.eq.s32.totalorder %s22, 0
      %p57 = por %p55, %p56
      %p58 = scmp.ne.s32.totalorder %s44, %s45
      %p59 = scmp.eq.s32.totalorder %s23, 1
      %p60 = por %p58, %p59
      %p62 = scmp.ne.s32.totalorder %s45, %s61
      %p63 = scmp.eq.s32.totalorder %s23, 0
      %p64 = por %p62, %p63
      %s65 = sadd.s32 %s24, %s25
      %s66 = sadd.s32 %s36, %s32
      %s67 = ssub.s32 %s65, %s66
      %p68 = scmp.eq.s32.totalorder %s67, 0
      %s70 = sadd.s32 %s69, 1
      %s71 = scalar_select %p68, %s69, %s70
      %p74 = pneg %p68
      %p75 = scmp.eq.s32.totalorder %s17, 1
      %p76 = por %p74, %p75
      %p77 = scmp.ne.s32.totalorder %s69, %s72
      %p78 = scmp.eq.s32.totalorder %s17, 0
      %p79 = por %p77, %p78
      %p80 = scmp.ne.s32.totalorder %s69, %s72
      %p81 = scmp.eq.s32.totalorder %s22, 1
      %p82 = por %p80, %p81
      %p83 = scmp.ne.s32.totalorder %s72, %s73
      %p84 = scmp.eq.s32.totalorder %s22, 0
      %p85 = por %p83, %p84
      %p86 = scmp.ne.s32.totalorder %s72, %s73
      %p87 = scmp.eq.s32.totalorder %s23, 1
      %p88 = por %p86, %p87
      %p90 = scmp.ne.s32.totalorder %s73, %s89
      %p91 = scmp.eq.s32.totalorder %s23, 0
      %p92 = por %p90, %p91
      %s93 = ssub.s32 %s24, %s36
      %p94 = scmp.eq.s32.totalorder %s93, 0
      %s96 = sadd.s32 %s95, 1
      %s97 = scalar_select %p94, %s95, %s96
      %p100 = pneg %p94
      %p101 = scmp.eq.s32.totalorder %s17, 1
      %p102 = por %p100, %p101
      %p103 = scmp.ne.s32.totalorder %s95, %s98
      %p104 = scmp.eq.s32.totalorder %s17, 0
      %p105 = por %p103, %p104
      %p106 = scmp.ne.s32.totalorder %s95, %s98
      %p107 = scmp.eq.s32.totalorder %s22, 1
      %p108 = por %p106, %p107
      %p109 = scmp.ne.s32.totalorder %s98, %s99
      %p110 = scmp.eq.s32.totalorder %s22, 0
      %p111 = por %p109, %p110
      %p112 = scmp.ne.s32.totalorder %s98, %s99
      %p113 = scmp.eq.s32.totalorder %s23, 1
      %p114 = por %p112, %p113
      %p116 = scmp.ne.s32.totalorder %s99, %s115
      %p117 = scmp.eq.s32.totalorder %s23, 0
      %p118 = por %p116, %p117
      %p119 = scmp.le.s32.totalorder 1, %s17
      %p120 = scmp.lt.s32.totalorder %s17, 3
      %p121 = pnand %p119, %p120
      %p122 = pneg %p121
      // Predicated region
      $region9: #{tpu_custom_call.1} parent=5 // pred_check
        _
      $region10: #{tpu_custom_call.1} parent=5 // pred_check_branch
        %124 = sbr.rel (%p121) target = $region12
      $region11: #{tpu_custom_call.1} parent=5 // pred_region
        %s125 = ssub.s32 %s17, 1
      $region12: #{tpu_custom_call.1} parent=5 // pred_fallthru
        _
      %p126 = scmp.lt.s32.totalorder %s17, 2
      // Predicated region
      $region13: #{tpu_custom_call.1} parent=5 // pred_check
        %p127 = pneg %p126
      $region14: #{tpu_custom_call.1} parent=5 // pred_check_branch
        %129 = sbr.rel (%p127) target = $region16
      $region15: #{tpu_custom_call.1} parent=5 // pred_region
        // Predicated region
        $region17: #{tpu_custom_call.1} parent=15 // pred_check
          %p130 = pneg %p51
        $region18: #{tpu_custom_call.1} parent=15 // pred_check_branch
          %132 = sbr.rel (%p130) target = $region20
        $region19: #{tpu_custom_call.1} parent=15 // pred_region
          %s133 = sand.u32 %s41, 1
          %s134 = scalar_lea.sflag [#allocation3], %s133
          %s135 = sand.u32 %s41, 1
          %s136 = smul.addr %s135, 8
          %s137 = scalar_lea.vmem [#allocation2], %s136
          %s138 = sadd.s32 %s24, %s25
          %s139 = smul.u32 4, %s138
          %s141 = ssub.s32 128, 128
          %142 = vsyncadd %s134, %s141
          %s143 = smul.addr %s139, 32
          %s144 = scalar_lea.hbm %s0, %s143
          %s146 = sshll.u32 %s137, 4
          %s147 = int_to_ptr.vmem [resolvable:$true] %s146
          %149 = dma.hbm_to_vmem [thread:$0]  %s144, 128, %s147, %s134
        $region20: #{tpu_custom_call.1} parent=15 // pred_fallthru
          _
        // Predicated region
        $region21: #{tpu_custom_call.1} parent=15 // pred_check
          %p150 = pneg %p79
        $region22: #{tpu_custom_call.1} parent=15 // pred_check_branch
          %152 = sbr.rel (%p150) target = $region24
        $region23: #{tpu_custom_call.1} parent=15 // pred_region
          %s153 = sand.u32 %s69, 1
          %s154 = scalar_lea.sflag [#allocation6], %s153
          %s155 = sand.u32 %s69, 1
          %s156 = smul.addr %s155, 16
          %s157 = scalar_lea.vmem [#allocation5], %s156
          %s158 = sadd.s32 %s24, %s25
          %s159 = smul.u32 4, %s158
          %s161 = ssub.s32 256, 256
          %162 = vsyncadd %s154, %s161
          %s163 = smul.addr %s159, 64
          %s164 = scalar_lea.hbm %s1, %s163
          %s166 = sshll.u32 %s157, 4
          %s167 = int_to_ptr.vmem [resolvable:$true] %s166
          %169 = dma.hbm_to_vmem [thread:$0]  %s164, 256, %s167, %s154
        $region24: #{tpu_custom_call.1} parent=15 // pred_fallthru
          _
      $region16: #{tpu_custom_call.1} parent=5 // pred_fallthru
        _
      %p170 = scmp.le.s32.totalorder 1, %s17
      %p171 = scmp.lt.s32.totalorder %s17, 3
      %p172 = pnand %p170, %p171
      %p173 = pneg %p172
      // Predicated region
      $region25: #{tpu_custom_call.1} parent=5 // pred_check
        _
      $region26: #{tpu_custom_call.1} parent=5 // pred_check_branch
        %175 = sbr.rel (%p172) target = $region28
      $region27: #{tpu_custom_call.1} parent=5 // pred_region
        %s176 = ssub.s32 %s17, 1
        %s177 = sand.u32 %s44, 1
        %s178 = scalar_lea.sflag [#allocation3], %s177
        %s179 = sand.u32 %s44, 1
        %s180 = smul.addr %s179, 8
        %s181 = scalar_lea.vmem [#allocation2], %s180
        // Predicated region
        $region29: #{tpu_custom_call.1} parent=27 // pred_check
          %p182 = pneg %p57
        $region30: #{tpu_custom_call.1} parent=27 // pred_check_branch
          %184 = sbr.rel (%p182) target = $region32
        $region31: #{tpu_custom_call.1} parent=27 // pred_region
          %185 = dma.done %s178, 128
        $region32: #{tpu_custom_call.1} parent=27 // pred_fallthru
          _
        %s186 = sand.u32 %s72, 1
        %s187 = scalar_lea.sflag [#allocation6], %s186
        %s188 = sand.u32 %s72, 1
        %s189 = smul.addr %s188, 16
        %s190 = scalar_lea.vmem [#allocation5], %s189
        // Predicated region
        $region33: #{tpu_custom_call.1} parent=27 // pred_check
          %p191 = pneg %p85
        $region34: #{tpu_custom_call.1} parent=27 // pred_check_branch
          %193 = sbr.rel (%p191) target = $region36
        $region35: #{tpu_custom_call.1} parent=27 // pred_region
          %194 = dma.done %s187, 256
        $region36: #{tpu_custom_call.1} parent=27 // pred_fallthru
          _
        %s195 = sand.u32 %s44, 1
        %s196 = scalar_lea.sflag [#allocation3], %s195
        %s197 = sand.u32 %s44, 1
        %s198 = smul.addr %s197, 8
        %s199 = scalar_lea.vmem [#allocation2], %s198
        %p200 = pneg %p57
        %p201 = pneg %p54
        %s202 = sand.u32 %s72, 1
        %s203 = scalar_lea.sflag [#allocation6], %s202
        %s204 = sand.u32 %s72, 1
        %s205 = smul.addr %s204, 16
        %s206 = scalar_lea.vmem [#allocation5], %s205
        %p207 = pneg %p85
        %p208 = pneg %p82
        %p209 = pneg %p111
        %p210 = pneg %p108
        %s211 = sand.u32 %s98, 1
        %s212 = scalar_lea.sflag [#allocation4], %s211
        %s213 = sand.u32 %s98, 1
        %s214 = smul.addr %s213, 2
        %s215 = scalar_lea.vmem [#allocation7], %s214
        %s216 = sadd.s32 %s26, %s27
        %s217 = smul.u32 4, %s216
        %s218 = sadd.s32 %s26, %s27
        %s219 = smul.u32 4, %s218
        %p220 = scmp.eq.s32.totalorder %s27, 0
        // Predicated region
        $region37: #{tpu_custom_call.1} parent=27 // pred_check
          %p221 = pneg %p220
        $region38: #{tpu_custom_call.1} parent=27 // pred_check_branch
          %223 = sbr.rel (%p221) target = $region40
        $region39: #{tpu_custom_call.1} parent=27 // pred_region
          %vm224 = vcmask 25600
          %225 = vst.msk [vmem:[%s215] sm:$0x3] %vm224, 0.0
        $region40: #{tpu_custom_call.1} parent=27 // pred_fallthru
          _
        %v226 = vld [vmem:[%s215] sm:$0x3]
        %v227 = vld [vmem:[%s181] sm:$0xff]
        %v228 = vld [vmem:[%s190] sm:$0xff]
        %v229 = vld [vmem:[%s190 + $0x8] sm:$0xff]
        %v231 = vcombine.high %v227, %v227
        %v233 = vunpack.c.l.s4 1983009808
        %v234 = vunpack.c.0.s8 %v233
        %v235 = vlaneseq
        %v236 = vshrl.u32 %v235, 7
        %v237 = vsub.s32 %v234, %v236
        %v238 = vrot.slane %v227, %v237
        %v240 = vunpack.c.l.s4 1983009808
        %v241 = vunpack.c.0.s8 %v240
        %v242 = vlaneseq
        %v243 = vshrl.u32 %v242, 7
        %v244 = vsub.s32 %v241, %v243
        %v245 = vrot.slane %v231, %v244
        %v246 = vcombine.high %v238, %v238
        %v247 = vcombine.high %v245, %v245
        %v254 = vcombine.high %v228, %v228
        %v255 = vcombine.high %v229, %v229
        %258 = vmatprep.subr.mxu0 %v254
        %259 = vmatpush1.xpose.msra.mxu0 %v228
        %260 = vmatprep.subr.mxu0 0.0
        %261 = vmatpush1.xpose.msra.mxu0 0.0
        %262 = vmatprep.subr.mxu0 0.0
        %263 = vmatpush1.xpose.msra.mxu0 0.0
        %264 = vmatprep.subr.mxu0 0.0
        %265 = vmatpush1.xpose.msra.mxu0 0.0
        %266 = vmatprep.subr.mxu0 0.0
        %267 = vmatpush1.xpose.msra.mxu0 0.0
        %268 = vmatprep.subr.mxu0 0.0
        %269 = vmatpush1.xpose.msra.mxu0 0.0
        %270 = vmatprep.subr.mxu0 0.0
        %271 = vmatpush1.xpose.msra.mxu0 0.0
        %272 = vmatprep.subr.mxu0 0.0
        %273 = vmatpush1.xpose.msra.mxu0 0.0
        %274 = vmatprep.subr.mxu0 0.0
        %275 = vmatpush1.xpose.msra.mxu0 0.0
        %276 = vmatprep.subr.mxu0 0.0
        %277 = vmatpush1.xpose.msra.mxu0 0.0
        %278 = vmatprep.subr.mxu0 0.0
        %279 = vmatpush1.xpose.msra.mxu0 0.0
        %280 = vmatprep.subr.mxu0 0.0
        %281 = vmatpush1.xpose.msra.mxu0 0.0
        %282 = vmatprep.subr.mxu0 0.0
        %283 = vmatpush1.xpose.msra.mxu0 0.0
        %284 = vmatprep.subr.mxu0 0.0
        %285 = vmatpush1.xpose.msra.mxu0 0.0
        %286 = vmatprep.subr.mxu0 0.0
        %287 = vmatpush1.xpose.msra.mxu0 0.0
        %288 = vmatprep.subr.mxu0 0.0
        %289 = vmatpush1.xpose.msra.mxu0 0.0
        %290 = vmatprep.subr.mxu0 0.0
        %291 = vmatpush1.xpose.msra.mxu0 0.0
        %292 = vmatprep.subr.mxu0 0.0
        %293 = vmatpush1.xpose.msra.mxu0 0.0
        %294 = vmatprep.subr.mxu0 0.0
        %295 = vmatpush1.xpose.msra.mxu0 0.0
        %296 = vmatprep.subr.mxu0 0.0
        %297 = vmatpush1.xpose.msra.mxu0 0.0
        %298 = vmatprep.subr.mxu0 0.0
        %299 = vmatpush1.xpose.msra.mxu0 0.0
        %300 = vmatprep.subr.mxu0 0.0
        %301 = vmatpush1.xpose.msra.mxu0 0.0
        %302 = vmatprep.subr.mxu0 0.0
        %303 = vmatpush1.xpose.msra.mxu0 0.0
        %304 = vmatprep.subr.mxu0 0.0
        %305 = vmatpush1.xpose.msra.mxu0 0.0
        %306 = vmatprep.subr.mxu0 0.0
        %307 = vmatpush1.xpose.msra.mxu0 0.0
        %308 = vmatprep.subr.mxu0 0.0
        %309 = vmatpush1.xpose.msra.mxu0 0.0
        %310 = vmatprep.subr.mxu0 0.0
        %311 = vmatpush1.xpose.msra.mxu0 0.0
        %312 = vmatprep.subr.mxu0 0.0
        %313 = vmatpush1.xpose.msra.mxu0 0.0
        %314 = vmatprep.subr.mxu0 0.0
        %315 = vmatpush1.xpose.msra.mxu0 0.0
        %316 = vmatprep.subr.mxu0 0.0
        %317 = vmatpush1.xpose.msra.mxu0 0.0
        %318 = vmatprep.subr.mxu0 0.0
        %319 = vmatpush1.xpose.msra.mxu0 0.0
        %320 = vmatprep.subr.mxu0 0.0
        %321 = vmatpush1.xpose.msra.mxu0 0.0
        %322 = vmatprep.mubr.f32.mxu0 %v246
        %323 = vmatmul.mubr.f32.gmra.mrb[0].mxu0 %v238
        %v324 = vpop.f32.mrb[0].mxu0
        %v325 = vadd.f32 0.0, %v324
        %v326 = vpop.f32.mrb[0].mxu0
        %327 = vdwg.mxu0
        %328 = vmatprep.subr.mxu0 %v255
        %329 = vmatpush1.xpose.msra.mxu0 %v229
        %330 = vmatprep.subr.mxu0 0.0
        %331 = vmatpush1.xpose.msra.mxu0 0.0
        %332 = vmatprep.subr.mxu0 0.0
        %333 = vmatpush1.xpose.msra.mxu0 0.0
        %334 = vmatprep.subr.mxu0 0.0
        %335 = vmatpush1.xpose.msra.mxu0 0.0
        %336 = vmatprep.subr.mxu0 0.0
        %337 = vmatpush1.xpose.msra.mxu0 0.0
        %338 = vmatprep.subr.mxu0 0.0
        %339 = vmatpush1.xpose.msra.mxu0 0.0
        %340 = vmatprep.subr.mxu0 0.0
        %341 = vmatpush1.xpose.msra.mxu0 0.0
        %342 = vmatprep.subr.mxu0 0.0
        %343 = vmatpush1.xpose.msra.mxu0 0.0
        %344 = vmatprep.subr.mxu0 0.0
        %345 = vmatpush1.xpose.msra.mxu0 0.0
        %346 = vmatprep.subr.mxu0 0.0
        %347 = vmatpush1.xpose.msra.mxu0 0.0
        %348 = vmatprep.subr.mxu0 0.0
        %349 = vmatpush1.xpose.msra.mxu0 0.0
        %350 = vmatprep.subr.mxu0 0.0
        %351 = vmatpush1.xpose.msra.mxu0 0.0
        %352 = vmatprep.subr.mxu0 0.0
        %353 = vmatpush1.xpose.msra.mxu0 0.0
        %354 = vmatprep.subr.mxu0 0.0
        %355 = vmatpush1.xpose.msra.mxu0 0.0
        %356 = vmatprep.subr.mxu0 0.0
        %357 = vmatpush1.xpose.msra.mxu0 0.0
        %358 = vmatprep.subr.mxu0 0.0
        %359 = vmatpush1.xpose.msra.mxu0 0.0
        %360 = vmatprep.subr.mxu0 0.0
        %361 = vmatpush1.xpose.msra.mxu0 0.0
        %362 = vmatprep.subr.mxu0 0.0
        %363 = vmatpush1.xpose.msra.mxu0 0.0
        %364 = vmatprep.subr.mxu0 0.0
        %365 = vmatpush1.xpose.msra.mxu0 0.0
        %366 = vmatprep.subr.mxu0 0.0
        %367 = vmatpush1.xpose.msra.mxu0 0.0
        %368 = vmatprep.subr.mxu0 0.0
        %369 = vmatpush1.xpose.msra.mxu0 0.0
        %370 = vmatprep.subr.mxu0 0.0
        %371 = vmatpush1.xpose.msra.mxu0 0.0
        %372 = vmatprep.subr.mxu0 0.0
        %373 = vmatpush1.xpose.msra.mxu0 0.0
        %374 = vmatprep.subr.mxu0 0.0
        %375 = vmatpush1.xpose.msra.mxu0 0.0
        %376 = vmatprep.subr.mxu0 0.0
        %377 = vmatpush1.xpose.msra.mxu0 0.0
        %378 = vmatprep.subr.mxu0 0.0
        %379 = vmatpush1.xpose.msra.mxu0 0.0
        %380 = vmatprep.subr.mxu0 0.0
        %381 = vmatpush1.xpose.msra.mxu0 0.0
        %382 = vmatprep.subr.mxu0 0.0
        %383 = vmatpush1.xpose.msra.mxu0 0.0
        %384 = vmatprep.subr.mxu0 0.0
        %385 = vmatpush1.xpose.msra.mxu0 0.0
        %386 = vmatprep.subr.mxu0 0.0
        %387 = vmatpush1.xpose.msra.mxu0 0.0
        %388 = vmatprep.subr.mxu0 0.0
        %389 = vmatpush1.xpose.msra.mxu0 0.0
        %390 = vmatprep.subr.mxu0 0.0
        %391 = vmatpush1.xpose.msra.mxu0 0.0
        %392 = vmatprep.mubr.f32.mxu0 %v247
        %393 = vmatmul.mubr.f32.gmra.mrb[0].mxu0 %v245
        %v394 = vpop.f32.mrb[0].mxu0
        %v395 = vadd.f32 %v325, %v394
        %v396 = vpop.f32.mrb[0].mxu0
        %397 = vdwg.mxu0
        %v398 = vadd.f32 %v226, %v395
        %vm399 = vcmask 25600
        %400 = vst.msk [vmem:[%s215] sm:$0x3] %vm399, %v398
        %s401 = sand.u32 %s98, 1
        %s402 = scalar_lea.sflag [#allocation4], %s401
        %s403 = sand.u32 %s98, 1
        %s404 = smul.addr %s403, 2
        %s405 = scalar_lea.vmem [#allocation7], %s404
        // Predicated region
        $region41: #{tpu_custom_call.1} parent=27 // pred_check
          %p406 = pneg %p108
        $region42: #{tpu_custom_call.1} parent=27 // pred_check_branch
          %408 = sbr.rel (%p406) target = $region44
        $region43: #{tpu_custom_call.1} parent=27 // pred_region
          %s410 = ssub.s32 32, 32
          %411 = vsyncadd %s402, %s410
          %s412 = smul.addr %s26, 32
          %s413 = scalar_lea.hbm %s2, %s412
          %s415 = sshll.u32 %s405, 4
          %s416 = int_to_ptr.vmem [resolvable:$true] %s415
          %418 = dma.vmem_to_hbm [thread:$0]  %s416, 32, %s413, %s402
        $region44: #{tpu_custom_call.1} parent=27 // pred_fallthru
          _
      $region28: #{tpu_custom_call.1} parent=5 // pred_fallthru
        _
      %p419 = scmp.le.s32.totalorder 2, %s17
      // Predicated region
      $region45: #{tpu_custom_call.1} parent=5 // pred_check
        %p420 = pneg %p419
      $region46: #{tpu_custom_call.1} parent=5 // pred_check_branch
        %422 = sbr.rel (%p420) target = $region48
      $region47: #{tpu_custom_call.1} parent=5 // pred_region
        %s423 = ssub.s32 %s17, 2
        // Predicated region
        $region49: #{tpu_custom_call.1} parent=47 // pred_check
          %p424 = pneg %p114
        $region50: #{tpu_custom_call.1} parent=47 // pred_check_branch
          %426 = sbr.rel (%p424) target = $region52
        $region51: #{tpu_custom_call.1} parent=47 // pred_region
          %s427 = sand.u32 %s99, 1
          %s428 = scalar_lea.sflag [#allocation4], %s427
          %s429 = sand.u32 %s99, 1
          %s430 = smul.addr %s429, 2
          %s431 = scalar_lea.vmem [#allocation7], %s430
          %432 = dma.done %s428, 32
        $region52: #{tpu_custom_call.1} parent=47 // pred_fallthru
          _
      $region48: #{tpu_custom_call.1} parent=5 // pred_fallthru
        _
    $region6: #{tpu_custom_call.1} parent=1 // loop_footer
      %s21 = sadd.s32 1, %s17
    $region7: #{tpu_custom_call.1} parent=1 // loop_footer_branch
      %16 = sbr.rel target = $region3
    $region8: #{tpu_custom_call.1} parent=1 // loop_exit
      _
    %433 = vsyncpa [#allocation3], 1
    %s434 = scalar_lea.sflag [#allocation3], 1
    %435 = vsyncpa %s434, 1
    %436 = vsyncpa [#allocation6], 1
    %s437 = scalar_lea.sflag [#allocation6], 1
    %438 = vsyncpa %s437, 1
    %439 = vsyncpa [#allocation4], 1
    %s440 = scalar_lea.sflag [#allocation4], 1
    %441 = vsyncpa %s440, 1

</llo_original>
